<compile_context>
chip_gen: v6e
topology: v6e:2x2x1
jax: 0.10.0
libtpu: 0.0.40
codegen_flags: <defaults>
</compile_context>

<pallas_src>
import functools
import math

import jax
import jax.numpy as jnp
from jax.experimental import pallas as pl
from jax.experimental.pallas import tpu as pltpu

LANE = 128                       # TPU lane width (last dim of kernel tiles)
MAX_TILE_R = 2048                # 2048 rows x 128 lanes x 4 B = 1 MiB f32 per timestep slab
TARGET_BLOCK_BYTES = 4 << 20     # ~4 MiB of x per grid step (in + out ~ 8 MiB HBM traffic)
UNROLL_CAP = 32                  # max timesteps unrolled inside one kernel body


def _lif_kernel(x_ref, spike_ref, mem_ref, *, thresh, tau, t_block):
    """One (feature-tile, time-block) grid point of the LIF recurrence.

    x_ref, spike_ref: (t_block, TILE_R, LANE) VMEM tiles in x.dtype.
    mem_ref:          (TILE_R, LANE) f32 VMEM scratch carrying the membrane
                      potential across the sequential time axis.
    """
    tb = pl.program_id(1)

    @pl.when(tb == 0)
    def _():
        mem_ref[...] = jnp.zeros_like(mem_ref)

    # One scratch read per block; the recurrence over t_block steps is
    # statically unrolled with mem carried as a local value.
    mem = mem_ref[...]
    for tt in range(t_block):
        # Transport dtype -> f32 compute (v5e has no bf16 VALU/EUP).
        mem = mem * tau + x_ref[tt].astype(jnp.float32)
        spike = mem > thresh                       # ZIF.forward: (mem - thresh > 0)
        spike_ref[tt] = spike.astype(spike_ref.dtype)   # 0/1 is lossless in x.dtype
        mem = jnp.where(spike, 0.0, mem)           # hard reset where spiked
    mem_ref[...] = mem


def _pick_tiles(T, R, itemsize):
    """Pick (tile_r, t_block): biggest single feature tile (no forced split on
    single-TC chips; multi-tile only when R > MAX_TILE_R, which also feeds both
    v7x TensorCores), then time-block up to ~TARGET_BLOCK_BYTES per grid step."""
    tile_r = R if R <= MAX_TILE_R else MAX_TILE_R   # == full dim or multiple of 8
    per_t_bytes = tile_r * LANE * itemsize
    tt_cap = max(1, min(T, UNROLL_CAP, TARGET_BLOCK_BYTES // per_t_bytes))
    t_block = 1
    for d in range(int(tt_cap), 0, -1):             # largest divisor of T <= cap
        if T % d == 0:
            t_block = d
            break
    return tile_r, t_block


@functools.partial(jax.jit, static_argnames=("thresh", "tau", "gama"))
def lif_spike(x, thresh=1.0, tau=0.5, gama=1.0):
    """LIFSpike forward.  x: (T, B, C, H, W) float array.  Returns same shape/dtype."""
    # gama only affects the surrogate gradient (ZIF.backward); forward ignores it.
    # TODO(synk): no custom_vjp is provided, so autodiff will not reproduce
    # ZIF.backward's surrogate gradient (inference-only kernel).
    orig_shape = x.shape
    T = orig_shape[0]
    n_feat = math.prod(orig_shape[1:])

    n_pad = (-n_feat) % LANE
    xf = x.reshape(T, n_feat)
    if n_pad:
        # TODO(synk): this pad + trailing slice cost two extra HBM passes; only
        # hit when n_feat is not a multiple of 128 (not the case here).
        xf = jnp.pad(xf, ((0, 0), (0, n_pad)))
    R = (n_feat + n_pad) // LANE
    xf = xf.reshape(T, R, LANE)        # free, layout-preserving reshape

    itemsize = jnp.dtype(x.dtype).itemsize
    tile_r, t_block = _pick_tiles(T, R, itemsize)
    grid = (pl.cdiv(R, tile_r), T // t_block)   # (parallel features, sequential time)

    # Explicit VMEM budget: double-buffered in + out blocks plus the mem scratch.
    block_bytes = t_block * tile_r * LANE * itemsize
    scratch_bytes = tile_r * LANE * 4
    vmem_limit = max(2 * 2 * block_bytes + scratch_bytes + (4 << 20), 16 << 20)

    kernel = functools.partial(
        _lif_kernel, thresh=float(thresh), tau=float(tau), t_block=t_block)

    out = pl.pallas_call(
        kernel,
        out_shape=jax.ShapeDtypeStruct((T, R, LANE), x.dtype),
        grid_spec=pltpu.PrefetchScalarGridSpec(
            num_scalar_prefetch=0,
            grid=grid,
            in_specs=[
                pl.BlockSpec((t_block, tile_r, LANE), lambda i, tb: (tb, i, 0)),
            ],
            out_specs=pl.BlockSpec((t_block, tile_r, LANE), lambda i, tb: (tb, i, 0)),
            scratch_shapes=[pltpu.VMEM((tile_r, LANE), jnp.float32)],
        ),
        compiler_params=pltpu.CompilerParams(
            dimension_semantics=("parallel", "arbitrary"),
            vmem_limit_bytes=int(vmem_limit),
        ),
    )(xf)

    out = out.reshape(T, R * LANE)
    if n_pad:
        out = out[:, :n_feat]
    return out.reshape(orig_shape)


def lif_spike_ref(x, thresh=1.0, tau=0.5):
    """Pure-JAX reference (mirrors the PyTorch loop)."""
    T = x.shape[0]
    mem = jnp.zeros_like(x[0])
    spikes = []
    for t in range(T):
        mem = mem * tau + x[t]
        spike = (mem - thresh > 0).astype(x.dtype)
        mem = (1.0 - spike) * mem
        spikes.append(spike)
    return jnp.stack(spikes, axis=0)


if __name__ == "__main__":
    key = jax.random.PRNGKey(0)
    T, B, C, H, W = 8, 2, 4, 16, 16
    x = jax.random.normal(key, (T, B, C, H, W), dtype=jnp.float32) * 1.5

    out = jax.block_until_ready(lif_spike(x, thresh=1.0, tau=0.5, gama=1.0))
    ref = lif_spike_ref(x, thresh=1.0, tau=0.5)

    assert out.shape == x.shape, (out.shape, x.shape)
    assert out.dtype == x.dtype
    assert jnp.array_equal(out, ref), "mismatch vs pure-JAX reference"
    print("KERNEL_OK")
</pallas_src>

<mosaic_0001>
module attributes {stable_mosaic.version = 11 : i64} {
  func.func @_lif_kernel(%arg0: i32, %arg1: i32, %arg2: memref<8x16x128xf32, #tpu.memory_space<vmem>>, %arg3: memref<8x16x128xf32, #tpu.memory_space<vmem>>, %arg4: memref<16x128xf32, #tpu.memory_space<vmem>>) attributes {dimension_semantics = [#tpu.dimension_semantics<parallel>, #tpu.dimension_semantics<arbitrary>], iteration_bounds = array<i64: 1, 1>, scalar_prefetch = 0 : i64, scratch_operands = 1 : i64, tpu.core_type = #tpu.core_type<tc>, window_params = [{transform_indices = @transform_0, window_bounds = array<i64: 8, 16, 128>}, {transform_indices = @transform_1, window_bounds = array<i64: 8, 16, 128>}]} {
    %c0_i32 = arith.constant 0 : i32
    %0 = arith.cmpi eq, %arg1, %c0_i32 : i32
    %1 = arith.extui %0 : i1 to i32
    %c0_i32_0 = arith.constant 0 : i32
    %2 = arith.cmpi ne, %1, %c0_i32_0 : i32
    scf.if %2 {
      %cst_68 = arith.constant 0.000000e+00 : f32
      %117 = vector.broadcast %cst_68 : f32 to vector<16x128xf32>
      %c0_69 = arith.constant 0 : index
      %c0_70 = arith.constant 0 : index
      %118 = vector.load %arg4[%c0_69, %c0_70] : memref<16x128xf32, #tpu.memory_space<vmem>>, vector<16x128xf32>
      tpu.vector_store %arg4[%c0_69, %c0_70], %117 {strides = array<i32>} : memref<16x128xf32, #tpu.memory_space<vmem>>, vector<16x128xf32>,
    } else {
    }
    %c0 = arith.constant 0 : index
    %c0_1 = arith.constant 0 : index
    %3 = vector.load %arg4[%c0, %c0_1] : memref<16x128xf32, #tpu.memory_space<vmem>>, vector<16x128xf32>
    %cst = arith.constant 5.000000e-01 : f32
    %4 = vector.broadcast %cst : f32 to vector<16x128xf32>
    %5 = arith.mulf %3, %4 : vector<16x128xf32>
    %c0_2 = arith.constant 0 : index
    %c0_3 = arith.constant 0 : index
    %c0_4 = arith.constant 0 : index
    %6 = vector.load %arg2[%c0_2, %c0_3, %c0_4] : memref<8x16x128xf32, #tpu.memory_space<vmem>>, vector<1x16x128xf32>
    %7 = vector.shape_cast %6 : vector<1x16x128xf32> to vector<16x128xf32>
    %8 = arith.addf %5, %7 : vector<16x128xf32>
    %cst_5 = arith.constant 1.000000e+00 : f32
    %9 = vector.broadcast %cst_5 : f32 to vector<16x128xf32>
    %10 = arith.cmpf ogt, %8, %9 : vector<16x128xf32>
    %11 = arith.extui %10 : vector<16x128xi1> to vector<16x128xi32>
    %12 = arith.sitofp %11 : vector<16x128xi32> to vector<16x128xf32>
    %c0_6 = arith.constant 0 : index
    %c0_7 = arith.constant 0 : index
    %c0_8 = arith.constant 0 : index
    %13 = vector.load %arg3[%c0_6, %c0_7, %c0_8] : memref<8x16x128xf32, #tpu.memory_space<vmem>>, vector<1x16x128xf32>
    %14 = vector.shape_cast %13 : vector<1x16x128xf32> to vector<16x128xf32>
    %15 = vector.shape_cast %12 : vector<16x128xf32> to vector<1x16x128xf32>
    tpu.vector_store %arg3[%c0_6, %c0_7, %c0_8], %15 {strides = array<i32>} : memref<8x16x128xf32, #tpu.memory_space<vmem>>, vector<1x16x128xf32>,
    %cst_9 = arith.constant 0.000000e+00 : f32
    %16 = vector.broadcast %cst_9 : f32 to vector<16x128xf32>
    %17 = arith.select %10, %16, %8 : vector<16x128xi1>, vector<16x128xf32>
    %cst_10 = arith.constant 5.000000e-01 : f32
    %18 = vector.broadcast %cst_10 : f32 to vector<16x128xf32>
    %19 = arith.mulf %17, %18 : vector<16x128xf32>
    %c1 = arith.constant 1 : index
    %c0_11 = arith.constant 0 : index
    %c0_12 = arith.constant 0 : index
    %20 = vector.load %arg2[%c1, %c0_11, %c0_12] : memref<8x16x128xf32, #tpu.memory_space<vmem>>, vector<1x16x128xf32>
    %21 = vector.shape_cast %20 : vector<1x16x128xf32> to vector<16x128xf32>
    %22 = arith.addf %19, %21 : vector<16x128xf32>
    %cst_13 = arith.constant 1.000000e+00 : f32
    %23 = vector.broadcast %cst_13 : f32 to vector<16x128xf32>
    %24 = arith.cmpf ogt, %22, %23 : vector<16x128xf32>
    %25 = arith.extui %24 : vector<16x128xi1> to vector<16x128xi32>
    %26 = arith.sitofp %25 : vector<16x128xi32> to vector<16x128xf32>
    %c1_14 = arith.constant 1 : index
    %c0_15 = arith.constant 0 : index
    %c0_16 = arith.constant 0 : index
    %27 = vector.load %arg3[%c1_14, %c0_15, %c0_16] : memref<8x16x128xf32, #tpu.memory_space<vmem>>, vector<1x16x128xf32>
    %28 = vector.shape_cast %27 : vector<1x16x128xf32> to vector<16x128xf32>
    %29 = vector.shape_cast %26 : vector<16x128xf32> to vector<1x16x128xf32>
    tpu.vector_store %arg3[%c1_14, %c0_15, %c0_16], %29 {strides = array<i32>} : memref<8x16x128xf32, #tpu.memory_space<vmem>>, vector<1x16x128xf32>,
    %cst_17 = arith.constant 0.000000e+00 : f32
    %30 = vector.broadcast %cst_17 : f32 to vector<16x128xf32>
    %31 = arith.select %24, %30, %22 : vector<16x128xi1>, vector<16x128xf32>
    %cst_18 = arith.constant 5.000000e-01 : f32
    %32 = vector.broadcast %cst_18 : f32 to vector<16x128xf32>
    %33 = arith.mulf %31, %32 : vector<16x128xf32>
    %c2 = arith.constant 2 : index
    %c0_19 = arith.constant 0 : index
    %c0_20 = arith.constant 0 : index
    %34 = vector.load %arg2[%c2, %c0_19, %c0_20] : memref<8x16x128xf32, #tpu.memory_space<vmem>>, vector<1x16x128xf32>
    %35 = vector.shape_cast %34 : vector<1x16x128xf32> to vector<16x128xf32>
    %36 = arith.addf %33, %35 : vector<16x128xf32>
    %cst_21 = arith.constant 1.000000e+00 : f32
    %37 = vector.broadcast %cst_21 : f32 to vector<16x128xf32>
    %38 = arith.cmpf ogt, %36, %37 : vector<16x128xf32>
    %39 = arith.extui %38 : vector<16x128xi1> to vector<16x128xi32>
    %40 = arith.sitofp %39 : vector<16x128xi32> to vector<16x128xf32>
    %c2_22 = arith.constant 2 : index
    %c0_23 = arith.constant 0 : index
    %c0_24 = arith.constant 0 : index
    %41 = vector.load %arg3[%c2_22, %c0_23, %c0_24] : memref<8x16x128xf32, #tpu.memory_space<vmem>>, vector<1x16x128xf32>
    %42 = vector.shape_cast %41 : vector<1x16x128xf32> to vector<16x128xf32>
    %43 = vector.shape_cast %40 : vector<16x128xf32> to vector<1x16x128xf32>
    tpu.vector_store %arg3[%c2_22, %c0_23, %c0_24], %43 {strides = array<i32>} : memref<8x16x128xf32, #tpu.memory_space<vmem>>, vector<1x16x128xf32>,
    %cst_25 = arith.constant 0.000000e+00 : f32
    %44 = vector.broadcast %cst_25 : f32 to vector<16x128xf32>
    %45 = arith.select %38, %44, %36 : vector<16x128xi1>, vector<16x128xf32>
    %cst_26 = arith.constant 5.000000e-01 : f32
    %46 = vector.broadcast %cst_26 : f32 to vector<16x128xf32>
    %47 = arith.mulf %45, %46 : vector<16x128xf32>
    %c3 = arith.constant 3 : index
    %c0_27 = arith.constant 0 : index
    %c0_28 = arith.constant 0 : index
    %48 = vector.load %arg2[%c3, %c0_27, %c0_28] : memref<8x16x128xf32, #tpu.memory_space<vmem>>, vector<1x16x128xf32>
    %49 = vector.shape_cast %48 : vector<1x16x128xf32> to vector<16x128xf32>
    %50 = arith.addf %47, %49 : vector<16x128xf32>
    %cst_29 = arith.constant 1.000000e+00 : f32
    %51 = vector.broadcast %cst_29 : f32 to vector<16x128xf32>
    %52 = arith.cmpf ogt, %50, %51 : vector<16x128xf32>
    %53 = arith.extui %52 : vector<16x128xi1> to vector<16x128xi32>
    %54 = arith.sitofp %53 : vector<16x128xi32> to vector<16x128xf32>
    %c3_30 = arith.constant 3 : index
    %c0_31 = arith.constant 0 : index
    %c0_32 = arith.constant 0 : index
    %55 = vector.load %arg3[%c3_30, %c0_31, %c0_32] : memref<8x16x128xf32, #tpu.memory_space<vmem>>, vector<1x16x128xf32>
    %56 = vector.shape_cast %55 : vector<1x16x128xf32> to vector<16x128xf32>
    %57 = vector.shape_cast %54 : vector<16x128xf32> to vector<1x16x128xf32>
    tpu.vector_store %arg3[%c3_30, %c0_31, %c0_32], %57 {strides = array<i32>} : memref<8x16x128xf32, #tpu.memory_space<vmem>>, vector<1x16x128xf32>,
    %cst_33 = arith.constant 0.000000e+00 : f32
    %58 = vector.broadcast %cst_33 : f32 to vector<16x128xf32>
    %59 = arith.select %52, %58, %50 : vector<16x128xi1>, vector<16x128xf32>
    %cst_34 = arith.constant 5.000000e-01 : f32
    %60 = vector.broadcast %cst_34 : f32 to vector<16x128xf32>
    %61 = arith.mulf %59, %60 : vector<16x128xf32>
    %c4 = arith.constant 4 : index
    %c0_35 = arith.constant 0 : index
    %c0_36 = arith.constant 0 : index
    %62 = vector.load %arg2[%c4, %c0_35, %c0_36] : memref<8x16x128xf32, #tpu.memory_space<vmem>>, vector<1x16x128xf32>
    %63 = vector.shape_cast %62 : vector<1x16x128xf32> to vector<16x128xf32>
    %64 = arith.addf %61, %63 : vector<16x128xf32>
    %cst_37 = arith.constant 1.000000e+00 : f32
    %65 = vector.broadcast %cst_37 : f32 to vector<16x128xf32>
    %66 = arith.cmpf ogt, %64, %65 : vector<16x128xf32>
    %67 = arith.extui %66 : vector<16x128xi1> to vector<16x128xi32>
    %68 = arith.sitofp %67 : vector<16x128xi32> to vector<16x128xf32>
    %c4_38 = arith.constant 4 : index
    %c0_39 = arith.constant 0 : index
    %c0_40 = arith.constant 0 : index
    %69 = vector.load %arg3[%c4_38, %c0_39, %c0_40] : memref<8x16x128xf32, #tpu.memory_space<vmem>>, vector<1x16x128xf32>
    %70 = vector.shape_cast %69 : vector<1x16x128xf32> to vector<16x128xf32>
    %71 = vector.shape_cast %68 : vector<16x128xf32> to vector<1x16x128xf32>
    tpu.vector_store %arg3[%c4_38, %c0_39, %c0_40], %71 {strides = array<i32>} : memref<8x16x128xf32, #tpu.memory_space<vmem>>, vector<1x16x128xf32>,
    %cst_41 = arith.constant 0.000000e+00 : f32
    %72 = vector.broadcast %cst_41 : f32 to vector<16x128xf32>
    %73 = arith.select %66, %72, %64 : vector<16x128xi1>, vector<16x128xf32>
    %cst_42 = arith.constant 5.000000e-01 : f32
    %74 = vector.broadcast %cst_42 : f32 to vector<16x128xf32>
    %75 = arith.mulf %73, %74 : vector<16x128xf32>
    %c5 = arith.constant 5 : index
    %c0_43 = arith.constant 0 : index
    %c0_44 = arith.constant 0 : index
    %76 = vector.load %arg2[%c5, %c0_43, %c0_44] : memref<8x16x128xf32, #tpu.memory_space<vmem>>, vector<1x16x128xf32>
    %77 = vector.shape_cast %76 : vector<1x16x128xf32> to vector<16x128xf32>
    %78 = arith.addf %75, %77 : vector<16x128xf32>
    %cst_45 = arith.constant 1.000000e+00 : f32
    %79 = vector.broadcast %cst_45 : f32 to vector<16x128xf32>
    %80 = arith.cmpf ogt, %78, %79 : vector<16x128xf32>
    %81 = arith.extui %80 : vector<16x128xi1> to vector<16x128xi32>
    %82 = arith.sitofp %81 : vector<16x128xi32> to vector<16x128xf32>
    %c5_46 = arith.constant 5 : index
    %c0_47 = arith.constant 0 : index
    %c0_48 = arith.constant 0 : index
    %83 = vector.load %arg3[%c5_46, %c0_47, %c0_48] : memref<8x16x128xf32, #tpu.memory_space<vmem>>, vector<1x16x128xf32>
    %84 = vector.shape_cast %83 : vector<1x16x128xf32> to vector<16x128xf32>
    %85 = vector.shape_cast %82 : vector<16x128xf32> to vector<1x16x128xf32>
    tpu.vector_store %arg3[%c5_46, %c0_47, %c0_48], %85 {strides = array<i32>} : memref<8x16x128xf32, #tpu.memory_space<vmem>>, vector<1x16x128xf32>,
    %cst_49 = arith.constant 0.000000e+00 : f32
    %86 = vector.broadcast %cst_49 : f32 to vector<16x128xf32>
    %87 = arith.select %80, %86, %78 : vector<16x128xi1>, vector<16x128xf32>
    %cst_50 = arith.constant 5.000000e-01 : f32
    %88 = vector.broadcast %cst_50 : f32 to vector<16x128xf32>
    %89 = arith.mulf %87, %88 : vector<16x128xf32>
    %c6 = arith.constant 6 : index
    %c0_51 = arith.constant 0 : index
    %c0_52 = arith.constant 0 : index
    %90 = vector.load %arg2[%c6, %c0_51, %c0_52] : memref<8x16x128xf32, #tpu.memory_space<vmem>>, vector<1x16x128xf32>
    %91 = vector.shape_cast %90 : vector<1x16x128xf32> to vector<16x128xf32>
    %92 = arith.addf %89, %91 : vector<16x128xf32>
    %cst_53 = arith.constant 1.000000e+00 : f32
    %93 = vector.broadcast %cst_53 : f32 to vector<16x128xf32>
    %94 = arith.cmpf ogt, %92, %93 : vector<16x128xf32>
    %95 = arith.extui %94 : vector<16x128xi1> to vector<16x128xi32>
    %96 = arith.sitofp %95 : vector<16x128xi32> to vector<16x128xf32>
    %c6_54 = arith.constant 6 : index
    %c0_55 = arith.constant 0 : index
    %c0_56 = arith.constant 0 : index
    %97 = vector.load %arg3[%c6_54, %c0_55, %c0_56] : memref<8x16x128xf32, #tpu.memory_space<vmem>>, vector<1x16x128xf32>
    %98 = vector.shape_cast %97 : vector<1x16x128xf32> to vector<16x128xf32>
    %99 = vector.shape_cast %96 : vector<16x128xf32> to vector<1x16x128xf32>
    tpu.vector_store %arg3[%c6_54, %c0_55, %c0_56], %99 {strides = array<i32>} : memref<8x16x128xf32, #tpu.memory_space<vmem>>, vector<1x16x128xf32>,
    %cst_57 = arith.constant 0.000000e+00 : f32
    %100 = vector.broadcast %cst_57 : f32 to vector<16x128xf32>
    %101 = arith.select %94, %100, %92 : vector<16x128xi1>, vector<16x128xf32>
    %cst_58 = arith.constant 5.000000e-01 : f32
    %102 = vector.broadcast %cst_58 : f32 to vector<16x128xf32>
    %103 = arith.mulf %101, %102 : vector<16x128xf32>
    %c7 = arith.constant 7 : index
    %c0_59 = arith.constant 0 : index
    %c0_60 = arith.constant 0 : index
    %104 = vector.load %arg2[%c7, %c0_59, %c0_60] : memref<8x16x128xf32, #tpu.memory_space<vmem>>, vector<1x16x128xf32>
    %105 = vector.shape_cast %104 : vector<1x16x128xf32> to vector<16x128xf32>
    %106 = arith.addf %103, %105 : vector<16x128xf32>
    %cst_61 = arith.constant 1.000000e+00 : f32
    %107 = vector.broadcast %cst_61 : f32 to vector<16x128xf32>
    %108 = arith.cmpf ogt, %106, %107 : vector<16x128xf32>
    %109 = arith.extui %108 : vector<16x128xi1> to vector<16x128xi32>
    %110 = arith.sitofp %109 : vector<16x128xi32> to vector<16x128xf32>
    %c7_62 = arith.constant 7 : index
    %c0_63 = arith.constant 0 : index
    %c0_64 = arith.constant 0 : index
    %111 = vector.load %arg3[%c7_62, %c0_63, %c0_64] : memref<8x16x128xf32, #tpu.memory_space<vmem>>, vector<1x16x128xf32>
    %112 = vector.shape_cast %111 : vector<1x16x128xf32> to vector<16x128xf32>
    %113 = vector.shape_cast %110 : vector<16x128xf32> to vector<1x16x128xf32>
    tpu.vector_store %arg3[%c7_62, %c0_63, %c0_64], %113 {strides = array<i32>} : memref<8x16x128xf32, #tpu.memory_space<vmem>>, vector<1x16x128xf32>,
    %cst_65 = arith.constant 0.000000e+00 : f32
    %114 = vector.broadcast %cst_65 : f32 to vector<16x128xf32>
    %115 = arith.select %108, %114, %106 : vector<16x128xi1>, vector<16x128xf32>
    %c0_66 = arith.constant 0 : index
    %c0_67 = arith.constant 0 : index
    %116 = vector.load %arg4[%c0_66, %c0_67] : memref<16x128xf32, #tpu.memory_space<vmem>>, vector<16x128xf32>
    tpu.vector_store %arg4[%c0_66, %c0_67], %115 {strides = array<i32>} : memref<16x128xf32, #tpu.memory_space<vmem>>, vector<16x128xf32>,
    return
  }
  func.func @transform_0(%arg0: i32, %arg1: i32) -> (i32, i32, i32) {
    %c0_i32 = arith.constant 0 : i32
    %c0_i32_0 = arith.constant 0 : i32
    return %arg1, %arg0, %c0_i32 : i32, i32, i32
  }
  func.func @transform_1(%arg0: i32, %arg1: i32) -> (i32, i32, i32) {
    %c0_i32 = arith.constant 0 : i32
    %c0_i32_0 = arith.constant 0 : i32
    return %arg1, %arg0, %c0_i32 : i32, i32, i32
  }
}

</mosaic_0001>

<llo_original>
// kernel: lif_spike.1
$region0: #{lif_spike.1}
  #allocation0 [shape = 'u32[]', space=smem, size = 0x4, offset = 0x4, fixed_abs, tag = 'smem constant byte address 0x4 - core index']
  #allocation1 [shape = 'u32[144,128]{1,0:T(1,128)}', space=vmem, size = 0x12000, scoped, tag = 'internal scratch']
  #allocation2 [shape = 'f32[16,128]{1,0:T(8,128)}', space=vmem, size = 0x2000, scoped, tag = 'scratch operand']
  %s0 = inlined_call_operand.vmem [shape: f32[8,16,128], index: 0, kind: input, shape index: {}]
  %s1 = inlined_call_operand.vmem [shape: f32[8,16,128], index: 1, kind: output, shape index: {}]
  %s2 = sld [smem:[#allocation0]]
  $region18: #{lif_spike.1} parent=0
    _
  %s4 = ssub.s32 1, %s2
  %s5 = scalar_select 0, %s4, %s2
  // Predicated region
  $region2: #{lif_spike.1} parent=0 // pred_check
    _
  $region3: #{lif_spike.1} parent=0 // pred_check_branch
    %7 = sbr.rel (0) target = $region5
  $region4: #{lif_spike.1} parent=0 // pred_region
    _
  $region5: #{lif_spike.1} parent=0 // pred_fallthru
    _
  %p8 = scmp.eq.s32.totalorder 0, 0
  // Predicated region
  $region6: #{lif_spike.1} parent=0 // pred_check
    %p9 = pneg %p8
  $region7: #{lif_spike.1} parent=0 // pred_check_branch
    %11 = sbr.rel (%p9) target = $region9
  $region8: #{lif_spike.1} parent=0 // pred_region
    %12 = vst [vmem:[#allocation2] sm:$0xff] 0.0
    %13 = vst [vmem:[#allocation2 + $0x8] sm:$0xff] 0.0
  $region9: #{lif_spike.1} parent=0 // pred_fallthru
    _
  %v14 = vld [vmem:[#allocation2] sm:$0xff]
  %v15 = vld [vmem:[#allocation2 + $0x8] sm:$0xff]
  %v16 = vmul.f32 %v14, 0.5
  %v17 = vmul.f32 %v15, 0.5
  %v18 = vld [vmem:[%s0] sm:$0xff]
  %v19 = vld [vmem:[%s0 + $0x8] sm:$0xff]
  %v20 = vadd.f32 %v16, %v18
  %v21 = vadd.f32 %v17, %v19
  %vm22 = vcmp.gt.f32.partialorder %v20, 1.0
  %vm23 = vcmp.gt.f32.partialorder %v21, 1.0
  %v24 = vsel %vm22, 1, 0
  %v25 = vsel %vm23, 1, 0
  %v26 = vcvt.s32.f32 %v24
  %v27 = vcvt.s32.f32 %v25
  %28 = vst [vmem:[%s1] sm:$0xff] %v26
  %29 = vst [vmem:[%s1 + $0x8] sm:$0xff] %v27
  %v30 = vsel %vm22, 0.0, %v20
  %v31 = vsel %vm23, 0.0, %v21
  %v32 = vmul.f32 %v30, 0.5
  %v33 = vmul.f32 %v31, 0.5
  %s34 = scalar_lea.vmem %s0, 16
  %v35 = vld [vmem:[%s34] sm:$0xff]
  %v36 = vld [vmem:[%s34 + $0x8] sm:$0xff]
  %v37 = vadd.f32 %v32, %v35
  %v38 = vadd.f32 %v33, %v36
  %vm39 = vcmp.gt.f32.partialorder %v37, 1.0
  %vm40 = vcmp.gt.f32.partialorder %v38, 1.0
  %v41 = vsel %vm39, 1, 0
  %v42 = vsel %vm40, 1, 0
  %v43 = vcvt.s32.f32 %v41
  %v44 = vcvt.s32.f32 %v42
  %s45 = scalar_lea.vmem %s1, 16
  %46 = vst [vmem:[%s45] sm:$0xff] %v43
  %47 = vst [vmem:[%s45 + $0x8] sm:$0xff] %v44
  %v48 = vsel %vm39, 0.0, %v37
  %v49 = vsel %vm40, 0.0, %v38
  %v50 = vmul.f32 %v48, 0.5
  %v51 = vmul.f32 %v49, 0.5
  %s52 = scalar_lea.vmem %s0, 32
  %v53 = vld [vmem:[%s52] sm:$0xff]
  %v54 = vld [vmem:[%s52 + $0x8] sm:$0xff]
  %v55 = vadd.f32 %v50, %v53
  %v56 = vadd.f32 %v51, %v54
  %vm57 = vcmp.gt.f32.partialorder %v55, 1.0
  %vm58 = vcmp.gt.f32.partialorder %v56, 1.0
  %v59 = vsel %vm57, 1, 0
  %v60 = vsel %vm58, 1, 0
  %v61 = vcvt.s32.f32 %v59
  %v62 = vcvt.s32.f32 %v60
  %s63 = scalar_lea.vmem %s1, 32
  %64 = vst [vmem:[%s63] sm:$0xff] %v61
  %65 = vst [vmem:[%s63 + $0x8] sm:$0xff] %v62
  %v66 = vsel %vm57, 0.0, %v55
  %v67 = vsel %vm58, 0.0, %v56
  %v68 = vmul.f32 %v66, 0.5
  %v69 = vmul.f32 %v67, 0.5
  %s70 = scalar_lea.vmem %s0, 48
  %v71 = vld [vmem:[%s70] sm:$0xff]
  %v72 = vld [vmem:[%s70 + $0x8] sm:$0xff]
  %v73 = vadd.f32 %v68, %v71
  %v74 = vadd.f32 %v69, %v72
  %vm75 = vcmp.gt.f32.partialorder %v73, 1.0
  %vm76 = vcmp.gt.f32.partialorder %v74, 1.0
  %v77 = vsel %vm75, 1, 0
  %v78 = vsel %vm76, 1, 0
  %v79 = vcvt.s32.f32 %v77
  %v80 = vcvt.s32.f32 %v78
  %s81 = scalar_lea.vmem %s1, 48
  %82 = vst [vmem:[%s81] sm:$0xff] %v79
  %83 = vst [vmem:[%s81 + $0x8] sm:$0xff] %v80
  %v84 = vsel %vm75, 0.0, %v73
  %v85 = vsel %vm76, 0.0, %v74
  %v86 = vmul.f32 %v84, 0.5
  %v87 = vmul.f32 %v85, 0.5
  %s88 = scalar_lea.vmem %s0, 64
  %v89 = vld [vmem:[%s88] sm:$0xff]
  %v90 = vld [vmem:[%s88 + $0x8] sm:$0xff]
  %v91 = vadd.f32 %v86, %v89
  %v92 = vadd.f32 %v87, %v90
  %vm93 = vcmp.gt.f32.partialorder %v91, 1.0
  %vm94 = vcmp.gt.f32.partialorder %v92, 1.0
  %v95 = vsel %vm93, 1, 0
  %v96 = vsel %vm94, 1, 0
  %v97 = vcvt.s32.f32 %v95
  %v98 = vcvt.s32.f32 %v96
  %s99 = scalar_lea.vmem %s1, 64
  %100 = vst [vmem:[%s99] sm:$0xff] %v97
  %101 = vst [vmem:[%s99 + $0x8] sm:$0xff] %v98
  %v102 = vsel %vm93, 0.0, %v91
  %v103 = vsel %vm94, 0.0, %v92
  %v104 = vmul.f32 %v102, 0.5
  %v105 = vmul.f32 %v103, 0.5
  %s106 = scalar_lea.vmem %s0, 80
  %v107 = vld [vmem:[%s106] sm:$0xff]
  %v108 = vld [vmem:[%s106 + $0x8] sm:$0xff]
  %v109 = vadd.f32 %v104, %v107
  %v110 = vadd.f32 %v105, %v108
  %vm111 = vcmp.gt.f32.partialorder %v109, 1.0
  %vm112 = vcmp.gt.f32.partialorder %v110, 1.0
  %v113 = vsel %vm111, 1, 0
  %v114 = vsel %vm112, 1, 0
  %v115 = vcvt.s32.f32 %v113
  %v116 = vcvt.s32.f32 %v114
  %s117 = scalar_lea.vmem %s1, 80
  %118 = vst [vmem:[%s117] sm:$0xff] %v115
  %119 = vst [vmem:[%s117 + $0x8] sm:$0xff] %v116
  %v120 = vsel %vm111, 0.0, %v109
  %v121 = vsel %vm112, 0.0, %v110
  %v122 = vmul.f32 %v120, 0.5
  %v123 = vmul.f32 %v121, 0.5
  %s124 = scalar_lea.vmem %s0, 96
  %v125 = vld [vmem:[%s124] sm:$0xff]
  %v126 = vld [vmem:[%s124 + $0x8] sm:$0xff]
  %v127 = vadd.f32 %v122, %v125
  %v128 = vadd.f32 %v123, %v126
  %vm129 = vcmp.gt.f32.partialorder %v127, 1.0
  %vm130 = vcmp.gt.f32.partialorder %v128, 1.0
  %v131 = vsel %vm129, 1, 0
  %v132 = vsel %vm130, 1, 0
  %v133 = vcvt.s32.f32 %v131
  %v134 = vcvt.s32.f32 %v132
  %s135 = scalar_lea.vmem %s1, 96
  %136 = vst [vmem:[%s135] sm:$0xff] %v133
  %137 = vst [vmem:[%s135 + $0x8] sm:$0xff] %v134
  %v138 = vsel %vm129, 0.0, %v127
  %v139 = vsel %vm130, 0.0, %v128
  %v140 = vmul.f32 %v138, 0.5
  %v141 = vmul.f32 %v139, 0.5
  %s142 = scalar_lea.vmem %s0, 112
  %v143 = vld [vmem:[%s142] sm:$0xff]
  %v144 = vld [vmem:[%s142 + $0x8] sm:$0xff]
  %v145 = vadd.f32 %v140, %v143
  %v146 = vadd.f32 %v141, %v144
  %vm147 = vcmp.gt.f32.partialorder %v145, 1.0
  %vm148 = vcmp.gt.f32.partialorder %v146, 1.0
  %v149 = vsel %vm147, 1, 0
  %v150 = vsel %vm148, 1, 0
  %v151 = vcvt.s32.f32 %v149
  %v152 = vcvt.s32.f32 %v150
  %s153 = scalar_lea.vmem %s1, 112
  %154 = vst [vmem:[%s153] sm:$0xff] %v151
  %155 = vst [vmem:[%s153 + $0x8] sm:$0xff] %v152
  %v156 = vsel %vm147, 0.0, %v145
  %v157 = vsel %vm148, 0.0, %v146
  %158 = vst [vmem:[#allocation2] sm:$0xff] %v156
  %159 = vst [vmem:[#allocation2 + $0x8] sm:$0xff] %v157
  // Predicated region
  $region10: #{lif_spike.1} parent=0 // pred_check
    _
  $region11: #{lif_spike.1} parent=0 // pred_check_branch
    %161 = sbr.rel (0) target = $region13
  $region12: #{lif_spike.1} parent=0 // pred_region
    _
  $region13: #{lif_spike.1} parent=0 // pred_fallthru
    _
  // Predicated region
  $region14: #{lif_spike.1} parent=0 // pred_check
    _
  $region15: #{lif_spike.1} parent=0 // pred_check_branch
    %163 = sbr.rel (0) target = $region17
  $region16: #{lif_spike.1} parent=0 // pred_region
    _
  $region17: #{lif_spike.1} parent=0 // pred_fallthru
    _

</llo_original>
